<compile_context>
chip_gen: v7x
topology: tpu7x:2x2x1
jax: 0.10.0
libtpu: 0.0.40
codegen_flags: <defaults>
</compile_context>

<pallas_src>
import jax
import jax.numpy as jnp
from jax.experimental import pallas as pl
from jax.experimental.pallas import tpu as pltpu


def _round_up(x, m):
    return ((x + m - 1) // m) * m


def actor_kernel(x_ref, w1_ref, b1_ref, w2_ref, b2_ref, w3_ref, b3_ref, o_ref):
    wt = w1_ref.dtype  # MXU input dtype (f32 or bf16); accumulation is f32.
    # Layer 1: Linear + ReLU
    x = x_ref[...].astype(wt)
    h1 = jnp.dot(x, w1_ref[...], preferred_element_type=jnp.float32) + b1_ref[...]
    h1 = jnp.maximum(h1, 0.0)
    # Layer 2: Linear + ReLU
    h2 = jnp.dot(h1.astype(wt), w2_ref[...],
                 preferred_element_type=jnp.float32) + b2_ref[...]
    h2 = jnp.maximum(h2, 0.0)
    # Layer 3: Linear + tanh (elementwise in f32 — v5e EUP has no bf16)
    out = jnp.dot(h2.astype(wt), w3_ref[...],
                  preferred_element_type=jnp.float32) + b3_ref[...]
    # Lane-pack: (block_b, out_size) -> (out_size, block_b) so the store is a
    # dense row along the lane axis (unmasked vst for full tiles).
    o_ref[...] = jnp.tanh(out).T.astype(o_ref.dtype)


def _pick_block_b(B, block_b):
    """Choose a batch tile.

    Rules:
      * single tile  -> block_b == B exactly (block == full array dims is
        always a legal layout, no padding needed),
      * multi tile   -> block_b must be a multiple of 128 so the lane-packed
        output blocks are lane-dense; the ragged last tile is masked by Pallas.
      * large B      -> at least 2 grid steps so v7x megacore has work for
        both TensorCores; cap at 1024 rows (per-step overhead amortization).
    """
    if block_b is None:
        if B <= 256:
            return B
        return min(1024, _round_up(pl.cdiv(B, 2), 128))
    block_b = max(8, int(block_b))
    if block_b >= B:
        return B
    return _round_up(block_b, 128)


def actor_forward(state, w1, b1, w2, b2, w3, b3, *,
                  block_b=None, param_dtype=None):
    """3-layer MLP forward. Grid over batch; weights resident in VMEM.

    param_dtype: optional storage dtype for the weight matrices (e.g.
    jnp.bfloat16 on v6e/v7x). Activations are cast to this dtype at each MXU
    input; biases and all elementwise math stay f32.
    """
    B, in_size = state.shape
    hidden = w1.shape[1]
    out_size = w3.shape[1]

    # --- Optional bf16 weight storage (MXU-native on v6e/v7x).
    if param_dtype is not None:
        w1c, w2c, w3c = (w.astype(param_dtype) for w in (w1, w2, w3))
    else:
        w1c, w2c, w3c = w1, w2, w3

    block_b = _pick_block_b(B, block_b)
    grid = (pl.cdiv(B, block_b),)

    # --- Scoped VMEM: actual footprint + headroom (v7x has only 64 MiB phys).
    wbytes = sum(int(a.size) * a.dtype.itemsize
                 for a in (w1c, b1, w2c, b2, w3c, b3))
    tile_bytes = block_b * in_size * 4 + out_size * block_b * 4       # in + out tiles
    act_bytes = 2 * block_b * max(hidden, out_size) * 4               # h1/h2 live values
    vmem_limit = int(min(64 * 1024 * 1024,
                         max(4 * 1024 * 1024,
                             4 * tile_bytes + 2 * act_bytes + wbytes + (1 << 20))))

    # --- Cost hint (unpadded) so XLA overlaps this small custom call.
    flops = 2 * B * (in_size * hidden + hidden * hidden + hidden * out_size)
    bytes_accessed = (int(state.size) * state.dtype.itemsize
                      + wbytes
                      + B * out_size * 4)
    cost = pl.CostEstimate(flops=int(flops),
                           transcendentals=int(B * out_size),
                           bytes_accessed=int(bytes_accessed))

    # Weights/biases: constant index_map -> DMA'd once, VMEM-resident.
    const = lambda a: pl.BlockSpec(a.shape, lambda i: (0,) * a.ndim)

    out = pl.pallas_call(
        actor_kernel,
        out_shape=jax.ShapeDtypeStruct((out_size, B), jnp.float32),
        grid=grid,
        in_specs=[pl.BlockSpec((block_b, in_size), lambda i: (i, 0)),
                  const(w1c), const(b1), const(w2c), const(b2),
                  const(w3c), const(b3)],
        out_specs=pl.BlockSpec((out_size, block_b), lambda i: (0, i)),
        compiler_params=pltpu.CompilerParams(
            dimension_semantics=("parallel",),   # batch axis -> 2 TCs on v7x
            vmem_limit_bytes=vmem_limit),
        cost_estimate=cost,
    )(state, w1c, b1, w2c, b2, w3c, b3)

    # (out_size, B) -> (B, out_size); trivial for out_size == 1.
    return out.T


def init_linear_params(key, fan_in, fan_out):
    """Deterministic init mimicking PyTorch nn.Linear default U(-1/sqrt(fan_in), ...)."""
    kw, kb = jax.random.split(key)
    bound = 1.0 / jnp.sqrt(jnp.float32(fan_in))
    # stored as (in, out) so the kernel does x @ W
    w = jax.random.uniform(kw, (fan_in, fan_out), jnp.float32, -bound, bound)
    b = jax.random.uniform(kb, (1, fan_out), jnp.float32, -bound, bound)
    return w, b


if __name__ == "__main__":
    # MountainCarContinuous Actor: state dim = 2, action dim = 1, hidden = 32.
    batch, input_size, hidden_size, output_size = 8, 2, 32, 1

    key = jax.random.PRNGKey(0)
    k_x, k1, k2, k3, k_mid, k_big = jax.random.split(key, 6)

    state = jax.random.normal(k_x, (batch, input_size), jnp.float32)
    w1, b1 = init_linear_params(k1, input_size, hidden_size)
    w2, b2 = init_linear_params(k2, hidden_size, hidden_size)
    w3, b3 = init_linear_params(k3, hidden_size, output_size)

    def ref_fwd(x):
        h = jnp.maximum(x @ w1 + b1, 0.0)
        h = jnp.maximum(h @ w2 + b2, 0.0)
        return jnp.tanh(h @ w3 + b3)

    # 1) Small batch, f32 weights (single grid step, block == full array dims).
    out = jax.block_until_ready(actor_forward(state, w1, b1, w2, b2, w3, b3))
    assert out.shape == (batch, output_size)
    assert jnp.allclose(out, ref_fwd(state), atol=1e-5, rtol=1e-5)

    # 2) Non-tile-multiple batch, explicit 128-row tile, bf16 weight storage
    #    -> exercises the multi-step pipelined grid + ragged last tile (masked
    #    store) + lane-packed output path.
    mid_b = 300
    state_mid = jax.random.normal(k_mid, (mid_b, input_size), jnp.float32)
    out_mid = jax.block_until_ready(
        actor_forward(state_mid, w1, b1, w2, b2, w3, b3,
                      block_b=128, param_dtype=jnp.bfloat16))
    assert out_mid.shape == (mid_b, output_size)
    assert jnp.allclose(out_mid, ref_fwd(state_mid), atol=2e-2, rtol=2e-2)

    # 3) Larger batch, default tile selection (>= 2 parallel grid steps for
    #    v7x megacore, ragged last tile), f32 weights.
    big_b = 1000
    state_big = jax.random.normal(k_big, (big_b, input_size), jnp.float32)
    out_big = jax.block_until_ready(
        actor_forward(state_big, w1, b1, w2, b2, w3, b3))
    assert out_big.shape == (big_b, output_size)
    assert jnp.allclose(out_big, ref_fwd(state_big), atol=1e-5, rtol=1e-5)

    print("KERNEL_OK")
</pallas_src>

<mosaic_0001>
module attributes {stable_mosaic.version = 11 : i64} {
  func.func @actor_kernel(%arg0: i32, %arg1: memref<8x2xf32, #tpu.memory_space<vmem>>, %arg2: memref<2x32xf32, #tpu.memory_space<vmem>>, %arg3: memref<1x32xf32, #tpu.memory_space<vmem>>, %arg4: memref<32x32xf32, #tpu.memory_space<vmem>>, %arg5: memref<1x32xf32, #tpu.memory_space<vmem>>, %arg6: memref<32x1xf32, #tpu.memory_space<vmem>>, %arg7: memref<1x1xf32, #tpu.memory_space<vmem>>, %arg8: memref<1x8xf32, #tpu.memory_space<vmem>>) attributes {dimension_semantics = [#tpu.dimension_semantics<parallel>], iteration_bounds = array<i64: 1>, scalar_prefetch = 0 : i64, scratch_operands = 0 : i64, tpu.core_type = #tpu.core_type<tc>, window_params = [{transform_indices = @transform_0, window_bounds = array<i64: 8, 2>}, {pipeline_mode = #tpu.pipeline_mode<synchronous>, transform_indices = @transform_1, window_bounds = array<i64: 2, 32>}, {pipeline_mode = #tpu.pipeline_mode<synchronous>, transform_indices = @transform_2, window_bounds = array<i64: 1, 32>}, {pipeline_mode = #tpu.pipeline_mode<synchronous>, transform_indices = @transform_3, window_bounds = array<i64: 32, 32>}, {pipeline_mode = #tpu.pipeline_mode<synchronous>, transform_indices = @transform_4, window_bounds = array<i64: 1, 32>}, {pipeline_mode = #tpu.pipeline_mode<synchronous>, transform_indices = @transform_5, window_bounds = array<i64: 32, 1>}, {pipeline_mode = #tpu.pipeline_mode<synchronous>, transform_indices = @transform_6, window_bounds = array<i64: 1, 1>}, {transform_indices = @transform_7, window_bounds = array<i64: 1, 8>}]} {
    %c0 = arith.constant 0 : index
    %c0_0 = arith.constant 0 : index
    %0 = vector.load %arg1[%c0, %c0_0] : memref<8x2xf32, #tpu.memory_space<vmem>>, vector<8x2xf32>
    %c0_1 = arith.constant 0 : index
    %c0_2 = arith.constant 0 : index
    %1 = vector.load %arg2[%c0_1, %c0_2] : memref<2x32xf32, #tpu.memory_space<vmem>>, vector<2x32xf32>
    %cst = arith.constant dense<0.000000e+00> : vector<8x32xf32>
    %2 = tpu.matmul %0, %1, %cst {dimension_numbers = #tpu.dot_dimension_numbers<[1], [0], [0], [1], [0, 0, 1, 1], [], []>} : vector<8x2xf32>, vector<2x32xf32>, vector<8x32xf32> -> vector<8x32xf32>
    %c0_3 = arith.constant 0 : index
    %c0_4 = arith.constant 0 : index
    %3 = vector.load %arg3[%c0_3, %c0_4] : memref<1x32xf32, #tpu.memory_space<vmem>>, vector<1x32xf32>
    %4 = vector.broadcast %3 : vector<1x32xf32> to vector<8x32xf32>
    %5 = arith.addf %2, %4 : vector<8x32xf32>
    %cst_5 = arith.constant 0.000000e+00 : f32
    %6 = vector.broadcast %cst_5 : f32 to vector<8x32xf32>
    %7 = arith.maximumf %5, %6 : vector<8x32xf32>
    %c0_6 = arith.constant 0 : index
    %c0_7 = arith.constant 0 : index
    %8 = vector.load %arg4[%c0_6, %c0_7] : memref<32x32xf32, #tpu.memory_space<vmem>>, vector<32x32xf32>
    %cst_8 = arith.constant dense<0.000000e+00> : vector<8x32xf32>
    %9 = tpu.matmul %7, %8, %cst_8 {dimension_numbers = #tpu.dot_dimension_numbers<[1], [0], [0], [1], [0, 0, 1, 1], [], []>} : vector<8x32xf32>, vector<32x32xf32>, vector<8x32xf32> -> vector<8x32xf32>
    %c0_9 = arith.constant 0 : index
    %c0_10 = arith.constant 0 : index
    %10 = vector.load %arg5[%c0_9, %c0_10] : memref<1x32xf32, #tpu.memory_space<vmem>>, vector<1x32xf32>
    %11 = vector.broadcast %10 : vector<1x32xf32> to vector<8x32xf32>
    %12 = arith.addf %9, %11 : vector<8x32xf32>
    %cst_11 = arith.constant 0.000000e+00 : f32
    %13 = vector.broadcast %cst_11 : f32 to vector<8x32xf32>
    %14 = arith.maximumf %12, %13 : vector<8x32xf32>
    %c0_12 = arith.constant 0 : index
    %c0_13 = arith.constant 0 : index
    %15 = vector.load %arg6[%c0_12, %c0_13] : memref<32x1xf32, #tpu.memory_space<vmem>>, vector<32x1xf32>
    %cst_14 = arith.constant dense<0.000000e+00> : vector<8x1xf32>
    %16 = tpu.matmul %14, %15, %cst_14 {dimension_numbers = #tpu.dot_dimension_numbers<[1], [0], [0], [1], [0, 0, 1, 1], [], []>} : vector<8x32xf32>, vector<32x1xf32>, vector<8x1xf32> -> vector<8x1xf32>
    %c0_15 = arith.constant 0 : index
    %c0_16 = arith.constant 0 : index
    %17 = vector.load %arg7[%c0_15, %c0_16] : memref<1x1xf32, #tpu.memory_space<vmem>>, vector<1x1xf32>
    %18 = vector.broadcast %17 : vector<1x1xf32> to vector<8x1xf32>
    %19 = arith.addf %16, %18 : vector<8x1xf32>
    %20 = math.tanh %19 : vector<8x1xf32>
    %21 = tpu.transpose %20, [1, 0] : vector<8x1xf32> -> vector<1x8xf32>
    %c0_17 = arith.constant 0 : index
    %c0_18 = arith.constant 0 : index
    %22 = vector.load %arg8[%c0_17, %c0_18] : memref<1x8xf32, #tpu.memory_space<vmem>>, vector<1x8xf32>
    tpu.vector_store %arg8[%c0_17, %c0_18], %21 {strides = array<i32>} : memref<1x8xf32, #tpu.memory_space<vmem>>, vector<1x8xf32>,
    return
  }
  func.func @transform_0(%arg0: i32) -> (i32, i32) {
    %c0_i32 = arith.constant 0 : i32
    %c0_i32_0 = arith.constant 0 : i32
    return %arg0, %c0_i32 : i32, i32
  }
  func.func @transform_1(%arg0: i32) -> (i32, i32) {
    %c0_i32 = arith.constant 0 : i32
    %c0_i32_0 = arith.constant 0 : i32
    %c0_i32_1 = arith.constant 0 : i32
    return %c0_i32, %c0_i32_0 : i32, i32
  }
  func.func @transform_2(%arg0: i32) -> (i32, i32) {
    %c0_i32 = arith.constant 0 : i32
    %c0_i32_0 = arith.constant 0 : i32
    %c0_i32_1 = arith.constant 0 : i32
    return %c0_i32, %c0_i32_0 : i32, i32
  }
  func.func @transform_3(%arg0: i32) -> (i32, i32) {
    %c0_i32 = arith.constant 0 : i32
    %c0_i32_0 = arith.constant 0 : i32
    %c0_i32_1 = arith.constant 0 : i32
    return %c0_i32, %c0_i32_0 : i32, i32
  }
  func.func @transform_4(%arg0: i32) -> (i32, i32) {
    %c0_i32 = arith.constant 0 : i32
    %c0_i32_0 = arith.constant 0 : i32
    %c0_i32_1 = arith.constant 0 : i32
    return %c0_i32, %c0_i32_0 : i32, i32
  }
  func.func @transform_5(%arg0: i32) -> (i32, i32) {
    %c0_i32 = arith.constant 0 : i32
    %c0_i32_0 = arith.constant 0 : i32
    %c0_i32_1 = arith.constant 0 : i32
    return %c0_i32, %c0_i32_0 : i32, i32
  }
  func.func @transform_6(%arg0: i32) -> (i32, i32) {
    %c0_i32 = arith.constant 0 : i32
    %c0_i32_0 = arith.constant 0 : i32
    %c0_i32_1 = arith.constant 0 : i32
    return %c0_i32, %c0_i32_0 : i32, i32
  }
  func.func @transform_7(%arg0: i32) -> (i32, i32) {
    %c0_i32 = arith.constant 0 : i32
    %c0_i32_0 = arith.constant 0 : i32
    return %c0_i32, %arg0 : i32, i32
  }
}

</mosaic_0001>

<llo_original>
// kernel: tpu_custom_call.1
$region0: #{tpu_custom_call.1}
  #allocation0 [shape = 'u32[]', space=smem, size = 0x4, offset = 0x4, fixed_abs, tag = 'smem constant byte address 0x4 - core index']
  #allocation1 [shape = 'u32[144,128]{1,0:T(1,128)}', space=vmem, size = 0x12000, scoped, tag = 'internal scratch']
  #allocation2 [shape = 'f32[1,1]{1,0:T(1,128)S(1)}', space=vmem, size = 0x200, scoped, tag = 'scoped memory for tpu_custom_call.1']
  %s0 = inlined_call_operand.vmem [shape: f32[8,2], index: 0, kind: input, shape index: {}]
  %s1 = inlined_call_operand.vmem [shape: f32[2,32], index: 1, kind: input, shape index: {}]
  %s2 = inlined_call_operand.vmem [shape: f32[1,32], index: 2, kind: input, shape index: {}]
  %s3 = inlined_call_operand.vmem [shape: f32[32,32], index: 3, kind: input, shape index: {}]
  %s4 = inlined_call_operand.vmem [shape: f32[1,32], index: 4, kind: input, shape index: {}]
  %s5 = inlined_call_operand.vmem [shape: f32[32,1], index: 5, kind: input, shape index: {}]
  %s6 = inlined_call_operand.<no memory space> [shape: f32[1,1], index: 6, kind: input, shape index: {}]
  %s7 = inlined_call_operand.hbm [shape: f32[1,8], index: 7, kind: output, shape index: {}]
  %s8 = sld [smem:[#allocation0]]
  $region38: #{tpu_custom_call.1} parent=0
    _
  %s10 = ssub.s32 1, %s8
  %s11 = scalar_select 0, %s10, %s8
  %v12 = vstv %s6
  %13 = vst [vmem:[#allocation2] sm:$0x1] %v12
  $region1: #{tpu_custom_call.1} parent=0
    #allocation3 [shape = 'u8[512]{0}', space=vmem, size = 0x400, scoped, tag = 'output window, operand 0, single buffered']
    #allocation4 [shape = 's32[1]{0}', space=sflag, size = 0x4, scoped, tag = 'scoped memory for tpu_custom_call.1']
    %14 = vsyncpa [#allocation4], 0
    // Predicated region
    $region2: #{tpu_custom_call.1} parent=1 // pred_check
      _
    $region3: #{tpu_custom_call.1} parent=1 // pred_check_branch
      %16 = sbr.rel (0) target = $region5
    $region4: #{tpu_custom_call.1} parent=1 // pred_region
      _
    $region5: #{tpu_custom_call.1} parent=1 // pred_fallthru
      _
    // Predicated region
    $region6: #{tpu_custom_call.1} parent=1 // pred_check
      _
    $region7: #{tpu_custom_call.1} parent=1 // pred_check_branch
      %18 = sbr.rel (0) target = $region9
    $region8: #{tpu_custom_call.1} parent=1 // pred_region
      _
    $region9: #{tpu_custom_call.1} parent=1 // pred_fallthru
      _
    // Predicated region
    $region10: #{tpu_custom_call.1} parent=1 // pred_check
      _
    $region11: #{tpu_custom_call.1} parent=1 // pred_check_branch
      %20 = sbr.rel (0) target = $region13
    $region12: #{tpu_custom_call.1} parent=1 // pred_region
      _
    $region13: #{tpu_custom_call.1} parent=1 // pred_fallthru
      _
    // Predicated region
    $region14: #{tpu_custom_call.1} parent=1 // pred_check
      _
    $region15: #{tpu_custom_call.1} parent=1 // pred_check_branch
      %22 = sbr.rel (0) target = $region17
    $region16: #{tpu_custom_call.1} parent=1 // pred_region
      _
    $region17: #{tpu_custom_call.1} parent=1 // pred_fallthru
      _
    // Predicated region
    $region18: #{tpu_custom_call.1} parent=1 // pred_check
      _
    $region19: #{tpu_custom_call.1} parent=1 // pred_check_branch
      %24 = sbr.rel (0) target = $region21
    $region20: #{tpu_custom_call.1} parent=1 // pred_region
      _
    $region21: #{tpu_custom_call.1} parent=1 // pred_fallthru
      _
    // Predicated region
    $region22: #{tpu_custom_call.1} parent=1 // pred_check
      _
    $region23: #{tpu_custom_call.1} parent=1 // pred_check_branch
      %26 = sbr.rel (0) target = $region25
    $region24: #{tpu_custom_call.1} parent=1 // pred_region
      _
    $region25: #{tpu_custom_call.1} parent=1 // pred_fallthru
      _
    // Predicated region
    $region26: #{tpu_custom_call.1} parent=1 // pred_check
      _
    $region27: #{tpu_custom_call.1} parent=1 // pred_check_branch
      %28 = sbr.rel (0) target = $region29
    $region28: #{tpu_custom_call.1} parent=1 // pred_region
      _
    $region29: #{tpu_custom_call.1} parent=1 // pred_fallthru
      _
    %v29 = vld [vmem:[%s0] sm:$0xff]
    %v30 = vld [vmem:[%s1] sm:$0x3]
    %v31 = vld [vmem:[%s2] sm:$0x1]
    %v33 = vlaneseq
    %v34 = vshrl.u32 %v33, 7
    %v35 = vsub.s32 0, %v34
    %v36 = vrot.slane %v31, %v35
    %vm38 = vcmask 15360
    %v40 = vsel %vm38, %v29, 0
    %vm42 = vcmask 1041408
    %v44 = vsel %vm42, %v30, 0
    %46 = vmatprep.subr.mxu0 0.0
    %47 = vmatpush1.msra.mxu0 %v44
    %48 = vmatprep.subr.mxu0 0.0
    %49 = vmatpush1.msra.mxu0 0.0
    %50 = vmatprep.subr.mxu0 0.0
    %51 = vmatpush1.msra.mxu0 0.0
    %52 = vmatprep.subr.mxu0 0.0
    %53 = vmatpush1.msra.mxu0 0.0
    %54 = vmatprep.subr.mxu0 0.0
    %55 = vmatpush1.msra.mxu0 0.0
    %56 = vmatprep.subr.mxu0 0.0
    %57 = vmatpush1.msra.mxu0 0.0
    %58 = vmatprep.subr.mxu0 0.0
    %59 = vmatpush1.msra.mxu0 0.0
    %60 = vmatprep.subr.mxu0 0.0
    %61 = vmatpush1.msra.mxu0 0.0
    %62 = vmatprep.subr.mxu0 0.0
    %63 = vmatpush1.msra.mxu0 0.0
    %64 = vmatprep.subr.mxu0 0.0
    %65 = vmatpush1.msra.mxu0 0.0
    %66 = vmatprep.subr.mxu0 0.0
    %67 = vmatpush1.msra.mxu0 0.0
    %68 = vmatprep.subr.mxu0 0.0
    %69 = vmatpush1.msra.mxu0 0.0
    %70 = vmatprep.subr.mxu0 0.0
    %71 = vmatpush1.msra.mxu0 0.0
    %72 = vmatprep.subr.mxu0 0.0
    %73 = vmatpush1.msra.mxu0 0.0
    %74 = vmatprep.subr.mxu0 0.0
    %75 = vmatpush1.msra.mxu0 0.0
    %76 = vmatprep.subr.mxu0 0.0
    %77 = vmatpush1.msra.mxu0 0.0
    %78 = vmatprep.subr.mxu0 0.0
    %79 = vmatpush1.msra.mxu0 0.0
    %80 = vmatprep.subr.mxu0 0.0
    %81 = vmatpush1.msra.mxu0 0.0
    %82 = vmatprep.subr.mxu0 0.0
    %83 = vmatpush1.msra.mxu0 0.0
    %84 = vmatprep.subr.mxu0 0.0
    %85 = vmatpush1.msra.mxu0 0.0
    %86 = vmatprep.subr.mxu0 0.0
    %87 = vmatpush1.msra.mxu0 0.0
    %88 = vmatprep.subr.mxu0 0.0
    %89 = vmatpush1.msra.mxu0 0.0
    %90 = vmatprep.subr.mxu0 0.0
    %91 = vmatpush1.msra.mxu0 0.0
    %92 = vmatprep.subr.mxu0 0.0
    %93 = vmatpush1.msra.mxu0 0.0
    %94 = vmatprep.subr.mxu0 0.0
    %95 = vmatpush1.msra.mxu0 0.0
    %96 = vmatprep.subr.mxu0 0.0
    %97 = vmatpush1.msra.mxu0 0.0
    %98 = vmatprep.subr.mxu0 0.0
    %99 = vmatpush1.msra.mxu0 0.0
    %100 = vmatprep.subr.mxu0 0.0
    %101 = vmatpush1.msra.mxu0 0.0
    %102 = vmatprep.subr.mxu0 0.0
    %103 = vmatpush1.msra.mxu0 0.0
    %104 = vmatprep.subr.mxu0 0.0
    %105 = vmatpush1.msra.mxu0 0.0
    %106 = vmatprep.subr.mxu0 0.0
    %107 = vmatpush1.msra.mxu0 0.0
    %108 = vmatprep.subr.mxu0 0.0
    %109 = vmatpush1.msra.mxu0 0.0
    %110 = vmatprep.mubr.f32.mxu0 0.0
    %111 = vmatmul.mubr.f32.gmra.mrb[0].mxu0 %v40
    %v112 = vpop.f32.mrb[0].mxu0
    %v113 = vadd.f32 %v36, %v112
    %v114 = vpop.f32.mrb[0].mxu0
    %115 = vdwg.mxu0
    %v116 = vmax.f32 %v113, 0.0
    %v117 = vld [vmem:[%s3] sm:$0xff]
    %v118 = vld [vmem:[%s3 + $0x8] sm:$0xff]
    %v119 = vld [vmem:[%s3 + $0x10] sm:$0xff]
    %v120 = vld [vmem:[%s3 + $0x18] sm:$0xff]
    %v121 = vld [vmem:[%s4] sm:$0x1]
    %v123 = vlaneseq
    %v124 = vshrl.u32 %v123, 7
    %v125 = vsub.s32 0, %v124
    %v126 = vrot.slane %v121, %v125
    %vm128 = vcmask 261120
    %v130 = vsel %vm128, %v116, 0
    %132 = vmatprep.subr.mxu0 0.0
    %133 = vmatpush1.msra.mxu0 %v117
    %134 = vmatprep.subr.mxu0 0.0
    %135 = vmatpush1.msra.mxu0 %v118
    %136 = vmatprep.subr.mxu0 0.0
    %137 = vmatpush1.msra.mxu0 %v119
    %138 = vmatprep.subr.mxu0 0.0
    %139 = vmatpush1.msra.mxu0 %v120
    %140 = vmatprep.subr.mxu0 0.0
    %141 = vmatpush1.msra.mxu0 0.0
    %142 = vmatprep.subr.mxu0 0.0
    %143 = vmatpush1.msra.mxu0 0.0
    %144 = vmatprep.subr.mxu0 0.0
    %145 = vmatpush1.msra.mxu0 0.0
    %146 = vmatprep.subr.mxu0 0.0
    %147 = vmatpush1.msra.mxu0 0.0
    %148 = vmatprep.subr.mxu0 0.0
    %149 = vmatpush1.msra.mxu0 0.0
    %150 = vmatprep.subr.mxu0 0.0
    %151 = vmatpush1.msra.mxu0 0.0
    %152 = vmatprep.subr.mxu0 0.0
    %153 = vmatpush1.msra.mxu0 0.0
    %154 = vmatprep.subr.mxu0 0.0
    %155 = vmatpush1.msra.mxu0 0.0
    %156 = vmatprep.subr.mxu0 0.0
    %157 = vmatpush1.msra.mxu0 0.0
    %158 = vmatprep.subr.mxu0 0.0
    %159 = vmatpush1.msra.mxu0 0.0
    %160 = vmatprep.subr.mxu0 0.0
    %161 = vmatpush1.msra.mxu0 0.0
    %162 = vmatprep.subr.mxu0 0.0
    %163 = vmatpush1.msra.mxu0 0.0
    %164 = vmatprep.subr.mxu0 0.0
    %165 = vmatpush1.msra.mxu0 0.0
    %166 = vmatprep.subr.mxu0 0.0
    %167 = vmatpush1.msra.mxu0 0.0
    %168 = vmatprep.subr.mxu0 0.0
    %169 = vmatpush1.msra.mxu0 0.0
    %170 = vmatprep.subr.mxu0 0.0
    %171 = vmatpush1.msra.mxu0 0.0
    %172 = vmatprep.subr.mxu0 0.0
    %173 = vmatpush1.msra.mxu0 0.0
    %174 = vmatprep.subr.mxu0 0.0
    %175 = vmatpush1.msra.mxu0 0.0
    %176 = vmatprep.subr.mxu0 0.0
    %177 = vmatpush1.msra.mxu0 0.0
    %178 = vmatprep.subr.mxu0 0.0
    %179 = vmatpush1.msra.mxu0 0.0
    %180 = vmatprep.subr.mxu0 0.0
    %181 = vmatpush1.msra.mxu0 0.0
    %182 = vmatprep.subr.mxu0 0.0
    %183 = vmatpush1.msra.mxu0 0.0
    %184 = vmatprep.subr.mxu0 0.0
    %185 = vmatpush1.msra.mxu0 0.0
    %186 = vmatprep.subr.mxu0 0.0
    %187 = vmatpush1.msra.mxu0 0.0
    %188 = vmatprep.subr.mxu0 0.0
    %189 = vmatpush1.msra.mxu0 0.0
    %190 = vmatprep.subr.mxu0 0.0
    %191 = vmatpush1.msra.mxu0 0.0
    %192 = vmatprep.subr.mxu0 0.0
    %193 = vmatpush1.msra.mxu0 0.0
    %194 = vmatprep.subr.mxu0 0.0
    %195 = vmatpush1.msra.mxu0 0.0
    %196 = vmatprep.mubr.f32.mxu0 0.0
    %197 = vmatmul.mubr.f32.gmra.mrb[0].mxu0 %v130
    %v198 = vpop.f32.mrb[0].mxu0
    %v199 = vadd.f32 %v126, %v198
    %v200 = vpop.f32.mrb[0].mxu0
    %201 = vdwg.mxu0
    %v202 = vmax.f32 %v199, 0.0
    %v203 = vld [vmem:[%s5] sm:$0xff]
    %v204 = vld [vmem:[%s5 + $0x8] sm:$0xff]
    %v205 = vld [vmem:[%s5 + $0x10] sm:$0xff]
    %v206 = vld [vmem:[%s5 + $0x18] sm:$0xff]
    %v207 = vld [vmem:[#allocation2] sm:$0x1]
    %v209 = vlaneseq
    %v210 = vshrl.u32 %v209, 7
    %v211 = vsub.s32 0, %v210
    %v212 = vrot.slane %v207, %v211
    %v215 = vsel %vm128, %v202, 0
    %217 = vmatprep.subr.mxu0 0.0
    %218 = vmatpush1.msra.mxu0 %v203
    %219 = vmatprep.subr.mxu0 0.0
    %220 = vmatpush1.msra.mxu0 %v204
    %221 = vmatprep.subr.mxu0 0.0
    %222 = vmatpush1.msra.mxu0 %v205
    %223 = vmatprep.subr.mxu0 0.0
    %224 = vmatpush1.msra.mxu0 %v206
    %225 = vmatprep.subr.mxu0 0.0
    %226 = vmatpush1.msra.mxu0 0.0
    %227 = vmatprep.subr.mxu0 0.0
    %228 = vmatpush1.msra.mxu0 0.0
    %229 = vmatprep.subr.mxu0 0.0
    %230 = vmatpush1.msra.mxu0 0.0
    %231 = vmatprep.subr.mxu0 0.0
    %232 = vmatpush1.msra.mxu0 0.0
    %233 = vmatprep.subr.mxu0 0.0
    %234 = vmatpush1.msra.mxu0 0.0
    %235 = vmatprep.subr.mxu0 0.0
    %236 = vmatpush1.msra.mxu0 0.0
    %237 = vmatprep.subr.mxu0 0.0
    %238 = vmatpush1.msra.mxu0 0.0
    %239 = vmatprep.subr.mxu0 0.0
    %240 = vmatpush1.msra.mxu0 0.0
    %241 = vmatprep.subr.mxu0 0.0
    %242 = vmatpush1.msra.mxu0 0.0
    %243 = vmatprep.subr.mxu0 0.0
    %244 = vmatpush1.msra.mxu0 0.0
    %245 = vmatprep.subr.mxu0 0.0
    %246 = vmatpush1.msra.mxu0 0.0
    %247 = vmatprep.subr.mxu0 0.0
    %248 = vmatpush1.msra.mxu0 0.0
    %249 = vmatprep.subr.mxu0 0.0
    %250 = vmatpush1.msra.mxu0 0.0
    %251 = vmatprep.subr.mxu0 0.0
    %252 = vmatpush1.msra.mxu0 0.0
    %253 = vmatprep.subr.mxu0 0.0
    %254 = vmatpush1.msra.mxu0 0.0
    %255 = vmatprep.subr.mxu0 0.0
    %256 = vmatpush1.msra.mxu0 0.0
    %257 = vmatprep.subr.mxu0 0.0
    %258 = vmatpush1.msra.mxu0 0.0
    %259 = vmatprep.subr.mxu0 0.0
    %260 = vmatpush1.msra.mxu0 0.0
    %261 = vmatprep.subr.mxu0 0.0
    %262 = vmatpush1.msra.mxu0 0.0
    %263 = vmatprep.subr.mxu0 0.0
    %264 = vmatpush1.msra.mxu0 0.0
    %265 = vmatprep.subr.mxu0 0.0
    %266 = vmatpush1.msra.mxu0 0.0
    %267 = vmatprep.subr.mxu0 0.0
    %268 = vmatpush1.msra.mxu0 0.0
    %269 = vmatprep.subr.mxu0 0.0
    %270 = vmatpush1.msra.mxu0 0.0
    %271 = vmatprep.subr.mxu0 0.0
    %272 = vmatpush1.msra.mxu0 0.0
    %273 = vmatprep.subr.mxu0 0.0
    %274 = vmatpush1.msra.mxu0 0.0
    %275 = vmatprep.subr.mxu0 0.0
    %276 = vmatpush1.msra.mxu0 0.0
    %277 = vmatprep.subr.mxu0 0.0
    %278 = vmatpush1.msra.mxu0 0.0
    %279 = vmatprep.subr.mxu0 0.0
    %280 = vmatpush1.msra.mxu0 0.0
    %281 = vmatprep.mubr.f32.mxu0 0.0
    %282 = vmatmul.mubr.f32.gmra.mrb[0].mxu0 %v215
    %v283 = vpop.f32.mrb[0].mxu0
    %v284 = vadd.f32 %v212, %v283
    %v285 = vpop.f32.mrb[0].mxu0
    %286 = vdwg.mxu0
    %v287 = vtanh.pop %v284
    %288 = vxpose.xlu0.b32.start [1/16] %v287, 128
    %289 = vxpose.xlu0.b32.cont [2/16] 0.0, 128
    %290 = vxpose.xlu0.b32.cont [3/16] 0.0, 128
    %291 = vxpose.xlu0.b32.cont [4/16] 0.0, 128
    %292 = vxpose.xlu0.b32.cont [5/16] 0.0, 128
    %293 = vxpose.xlu0.b32.cont [6/16] 0.0, 128
    %294 = vxpose.xlu0.b32.cont [7/16] 0.0, 128
    %295 = vxpose.xlu0.b32.cont [8/16] 0.0, 128
    %296 = vxpose.xlu0.b32.cont [9/16] 0.0, 128
    %297 = vxpose.xlu0.b32.cont [10/16] 0.0, 128
    %298 = vxpose.xlu0.b32.cont [11/16] 0.0, 128
    %299 = vxpose.xlu0.b32.cont [12/16] 0.0, 128
    %300 = vxpose.xlu0.b32.cont [13/16] 0.0, 128
    %301 = vxpose.xlu0.b32.cont [14/16] 0.0, 128
    %302 = vxpose.xlu0.b32.cont [15/16] 0.0, 128
    %303 = vxpose.xlu0.b32.end [16/16] 0.0, 128
    %v304 = vpop.trf.xlu0
    %v305 = vpop.trf.xlu0
    %v306 = vpop.trf.xlu0
    %v307 = vpop.trf.xlu0
    %v308 = vpop.trf.xlu0
    %v309 = vpop.trf.xlu0
    %v310 = vpop.trf.xlu0
    %v311 = vpop.trf.xlu0
    %v312 = vpop.trf.xlu0
    %v313 = vpop.trf.xlu0
    %v314 = vpop.trf.xlu0
    %v315 = vpop.trf.xlu0
    %v316 = vpop.trf.xlu0
    %v317 = vpop.trf.xlu0
    %v318 = vpop.trf.xlu0
    %v319 = vpop.trf.xlu0
    %vm320 = vcmask 57344
    %321 = vst.msk [vmem:[#allocation3] sm:$0x1] %vm320, %v304
    // Predicated region
    $region30: #{tpu_custom_call.1} parent=1 // pred_check
      _
    $region31: #{tpu_custom_call.1} parent=1 // pred_check_branch
      %323 = sbr.rel (0) target = $region33
    $region32: #{tpu_custom_call.1} parent=1 // pred_region
      %s325 = ssub.s32 16, 16
      %326 = vsyncadd [#allocation4], %s325
      %s328 = sshll.u32 [#allocation3], 4
      %s329 = int_to_ptr.vmem [resolvable:$true] %s328
      %331 = dma.vmem_to_hbm [thread:$0]  %s329, 16, %s7, [#allocation4]
    $region33: #{tpu_custom_call.1} parent=1 // pred_fallthru
      _
    // Predicated region
    $region34: #{tpu_custom_call.1} parent=1 // pred_check
      _
    $region35: #{tpu_custom_call.1} parent=1 // pred_check_branch
      %333 = sbr.rel (0) target = $region37
    $region36: #{tpu_custom_call.1} parent=1 // pred_region
      %334 = dma.done [#allocation4], 16
    $region37: #{tpu_custom_call.1} parent=1 // pred_fallthru
      _
    %335 = vsyncpa [#allocation4], 1

</llo_original>
